<compile_context>
chip_gen: v7x
topology: tpu7x:2x2x1
jax: 0.10.0
libtpu: 0.0.40
codegen_flags: <defaults>
</compile_context>

<pallas_src>
import functools

import jax
import jax.numpy as jnp
from jax.experimental import pallas as pl
from jax.experimental.pallas import tpu as pltpu


# ----------------------------- kernel -----------------------------------------

def mlp_kernel(x_ref, w1_ref, b1_ref, w2_ref, b2_ref, w3_ref, b3_ref, o_ref):
    cdt = w1_ref.dtype                      # explicit MXU operand dtype (set by the wrapper)
    x = x_ref[...].astype(cdt)

    # fc1 + SiLU  (f32 accumulation, bias add + activation on the f32 accumulator)
    h = jnp.dot(x, w1_ref[...], preferred_element_type=jnp.float32) + b1_ref[...]
    h = h * jax.nn.sigmoid(h)

    # fc2 + SiLU
    h = jnp.dot(h.astype(cdt), w2_ref[...], preferred_element_type=jnp.float32) + b2_ref[...]
    h = h * jax.nn.sigmoid(h)

    # fc3 (no activation)
    o = jnp.dot(h.astype(cdt), w3_ref[...], preferred_element_type=jnp.float32) + b3_ref[...]
    o_ref[...] = o.astype(o_ref.dtype)


# ----------------------------- wrapper -----------------------------------------

def _round_up(n, m):
    return ((n + m - 1) // m) * m


def _sublane_multiple(dtype):
    # Full sublane packing: 8 rows for 32-bit, 16 for 16-bit, 32 for 8-bit dtypes.
    return 8 * (4 // jnp.dtype(dtype).itemsize)


def _vmem_budget_bytes():
    try:
        cap = pltpu.get_tpu_info().vmem_capacity_bytes
    except Exception:
        cap = 64 * 1024 * 1024          # conservative: v7x per-TC VMEM
    # ~80% of capacity (=> ~51 MiB on v7x's 64 MiB, ~102 MiB on v5e/v6e's 128 MiB), capped.
    return min(int(cap * 0.8), 100 * 1024 * 1024)


def mlp_forward(params, x, *, tile_m=512, compute_dtype=None,
                single_buffer_weights=True, interpret=False):
    """Forward pass of MLP: fc3(silu(fc2(silu(fc1(x)))))."""
    if compute_dtype is None:
        compute_dtype = x.dtype          # explicit; pass jnp.bfloat16 for full-rate MXU

    w1, b1 = params['w1'], params['b1']
    w2, b2 = params['w2'], params['b2']
    w3, b3 = params['w3'], params['b3']

    H, I, E = w1.shape[0], w1.shape[1], w3.shape[1]
    Hp, Ip, Ep = (_round_up(d, 128) for d in (H, I, E))

    # ---- lane-dense feature dims: zero-pad H/I/E to multiples of 128 (exact: silu(0) == 0) ----
    def pad2(a, r, c):
        return a if a.shape == (r, c) else jnp.pad(a, ((0, r - a.shape[0]), (0, c - a.shape[1])))

    w1p = pad2(w1, Hp, Ip).astype(compute_dtype)   # MXU operands in compute_dtype
    w2p = pad2(w2, Ip, Ip).astype(compute_dtype)
    w3p = pad2(w3, Ip, Ep).astype(compute_dtype)
    b1p = pad2(b1, 1, Ip).astype(jnp.float32)      # biases add onto the f32 accumulator
    b2p = pad2(b2, 1, Ip).astype(jnp.float32)
    b3p = pad2(b3, 1, Ep).astype(jnp.float32)

    lead = x.shape[:-1]
    x2d = x.reshape(-1, H)
    if Hp != H:
        x2d = jnp.pad(x2d, ((0, 0), (0, Hp - H)))
    M = x2d.shape[0]

    # ---- row tile: dtype sublane multiple; no M padding (ragged last tile handled by Pallas) ----
    sub = _sublane_multiple(compute_dtype)
    tm = min(tile_m, _round_up(M, sub))
    if M > 4 * sub:
        # Aim for >= 4 grid steps: both v7x TensorCores get work and the next x-tile DMA overlaps.
        tm = min(tm, max(sub, _round_up(pl.cdiv(M, 4), sub)))

    vmem_limit = _vmem_budget_bytes()
    w_item = jnp.dtype(compute_dtype).itemsize
    w_bufs = 1 if single_buffer_weights else 2
    weight_bytes = (Hp * Ip + Ip * Ip + Ip * Ep) * w_item
    # TODO(synk): add a weight-tiled fallback (extra grid axis over fc2's K with an f32
    # accumulator) for configs where the resident weights alone exceed the per-TC VMEM budget.
    if w_bufs * weight_bytes > 0.6 * vmem_limit:
        tm = max(sub, min(tm, 256))     # shrink the row tile so double-buffered x/o tiles still fit

    grid = (pl.cdiv(M, tm),)

    # ---- dtype-aware cost estimate (weights counted once: grid-resident) ----
    act_item = jnp.dtype(x.dtype).itemsize
    flops = 2 * M * (Hp * Ip + Ip * Ip + Ip * Ep)
    transcendentals = 2 * M * Ip
    bytes_accessed = (M * Hp * act_item + M * Ep * act_item      # streamed activations in/out
                      + weight_bytes + (2 * Ip + Ep) * 4)        # resident weights + f32 biases

    def wspec(shape):
        # Grid-invariant operand: constant index_map, optionally single-buffered (no re-DMA).
        if single_buffer_weights:
            return pl.BlockSpec(shape, lambda i: (0, 0), pipeline_mode=pl.Buffered(1))
        return pl.BlockSpec(shape, lambda i: (0, 0))

    out = pl.pallas_call(
        mlp_kernel,
        out_shape=jax.ShapeDtypeStruct((M, Ep), x.dtype),
        grid=grid,
        in_specs=[
            pl.BlockSpec((tm, Hp), lambda i: (i, 0)),   # activation row tile (streamed, 2-buffered)
            wspec((Hp, Ip)), wspec((1, Ip)),            # fc1 weight / bias (VMEM-resident)
            wspec((Ip, Ip)), wspec((1, Ip)),            # fc2 weight / bias
            wspec((Ip, Ep)), wspec((1, Ep)),            # fc3 weight / bias
        ],
        out_specs=pl.BlockSpec((tm, Ep), lambda i: (i, 0)),   # lane-dense (Ep % 128 == 0) output
        compiler_params=pltpu.CompilerParams(
            dimension_semantics=("parallel",),           # megacore-shardable row axis
            vmem_limit_bytes=vmem_limit,
        ),
        cost_estimate=pl.CostEstimate(
            flops=flops, transcendentals=transcendentals, bytes_accessed=bytes_accessed),
        interpret=interpret,
    )(x2d, w1p, b1p, w2p, b2p, w3p, b3p)

    if Ep != E:
        out = out[:, :E]
    return out.reshape(*lead, E)


# ----------------------------- pure-JAX reference ------------------------------

def reference_forward(params, x):
    h = jax.nn.silu(x @ params['w1'] + params['b1'][0])
    h = jax.nn.silu(h @ params['w2'] + params['b2'][0])
    return h @ params['w3'] + params['b3'][0]


# ----------------------------- params -----------------------------------------

def init_params(key, H, I, E):
    ks = jax.random.split(key, 6)

    def w(k, shape, scale=0.05):
        return scale * jax.random.normal(k, shape, jnp.float32)

    return {
        'w1': w(ks[0], (H, I)), 'b1': w(ks[1], (1, I)),   # fc1: hidden -> intermediate
        'w2': w(ks[2], (I, I)), 'b2': w(ks[3], (1, I)),   # fc2: intermediate -> intermediate
        'w3': w(ks[4], (I, E)), 'b3': w(ks[5], (1, E)),   # fc3: intermediate -> n_embd
    }


# ----------------------------- main --------------------------------------------

if __name__ == "__main__":
    B, S = 2, 8                 # batch, sequence
    H, I, E = 32, 64, 48        # hidden_size, intermediate_size, language_model n_embd

    key = jax.random.PRNGKey(0)
    k_x, k_p = jax.random.split(key)
    x = jax.random.normal(k_x, (B, S, H), jnp.float32)
    params = init_params(k_p, H, I, E)

    # f32 compute path (tight check against the pure-JAX reference).
    single_buffer = True
    fwd = jax.jit(mlp_forward)
    try:
        out = jax.block_until_ready(fwd(params, x))
    except Exception:
        # Fallback for jax builds that reject pl.Buffered(1) single-buffered weight specs.
        single_buffer = False
        fwd = jax.jit(functools.partial(mlp_forward, single_buffer_weights=False))
        out = jax.block_until_ready(fwd(params, x))

    ref = reference_forward(params, x)
    assert out.shape == (B, S, E), out.shape
    max_err = float(jnp.max(jnp.abs(out - ref)))
    assert jnp.allclose(out, ref, rtol=1e-4, atol=1e-4), f"f32 max_err={max_err}"

    # Explicit bf16 MXU-operand path (loose tolerance vs the f32 reference).
    fwd_bf16 = jax.jit(functools.partial(
        mlp_forward, compute_dtype=jnp.bfloat16, single_buffer_weights=single_buffer))
    out_bf16 = jax.block_until_ready(fwd_bf16(params, x))
    max_err_bf16 = float(jnp.max(jnp.abs(out_bf16.astype(jnp.float32) - ref)))
    assert jnp.allclose(out_bf16.astype(jnp.float32), ref, rtol=5e-2, atol=5e-2), \
        f"bf16 max_err={max_err_bf16}"

    print("KERNEL_OK")
</pallas_src>

<mosaic_0001>
module attributes {stable_mosaic.version = 11 : i64} {
  func.func @mlp_kernel(%arg0: i32, %arg1: memref<16x128xf32, #tpu.memory_space<vmem>>, %arg2: memref<128x128xf32, #tpu.memory_space<vmem>>, %arg3: memref<1x128xf32, #tpu.memory_space<vmem>>, %arg4: memref<128x128xf32, #tpu.memory_space<vmem>>, %arg5: memref<1x128xf32, #tpu.memory_space<vmem>>, %arg6: memref<128x128xf32, #tpu.memory_space<vmem>>, %arg7: memref<1x128xf32, #tpu.memory_space<vmem>>, %arg8: memref<16x128xf32, #tpu.memory_space<vmem>>) attributes {dimension_semantics = [#tpu.dimension_semantics<parallel>], iteration_bounds = array<i64: 1>, scalar_prefetch = 0 : i64, scratch_operands = 0 : i64, tpu.core_type = #tpu.core_type<tc>, window_params = [{transform_indices = @transform_0, window_bounds = array<i64: 16, 128>}, {pipeline_mode = #tpu.pipeline_mode<synchronous>, transform_indices = @transform_1, window_bounds = array<i64: 128, 128>}, {pipeline_mode = #tpu.pipeline_mode<synchronous>, transform_indices = @transform_2, window_bounds = array<i64: 1, 128>}, {pipeline_mode = #tpu.pipeline_mode<synchronous>, transform_indices = @transform_3, window_bounds = array<i64: 128, 128>}, {pipeline_mode = #tpu.pipeline_mode<synchronous>, transform_indices = @transform_4, window_bounds = array<i64: 1, 128>}, {pipeline_mode = #tpu.pipeline_mode<synchronous>, transform_indices = @transform_5, window_bounds = array<i64: 128, 128>}, {pipeline_mode = #tpu.pipeline_mode<synchronous>, transform_indices = @transform_6, window_bounds = array<i64: 1, 128>}, {transform_indices = @transform_7, window_bounds = array<i64: 16, 128>}]} {
    %c0 = arith.constant 0 : index
    %c0_0 = arith.constant 0 : index
    %0 = vector.load %arg1[%c0, %c0_0] : memref<16x128xf32, #tpu.memory_space<vmem>>, vector<16x128xf32>
    %c0_1 = arith.constant 0 : index
    %c0_2 = arith.constant 0 : index
    %1 = vector.load %arg2[%c0_1, %c0_2] : memref<128x128xf32, #tpu.memory_space<vmem>>, vector<128x128xf32>
    %cst = arith.constant dense<0.000000e+00> : vector<16x128xf32>
    %2 = tpu.matmul %0, %1, %cst {dimension_numbers = #tpu.dot_dimension_numbers<[1], [0], [0], [1], [0, 0, 1, 1], [], []>} : vector<16x128xf32>, vector<128x128xf32>, vector<16x128xf32> -> vector<16x128xf32>
    %c0_3 = arith.constant 0 : index
    %c0_4 = arith.constant 0 : index
    %3 = vector.load %arg3[%c0_3, %c0_4] : memref<1x128xf32, #tpu.memory_space<vmem>>, vector<1x128xf32>
    %4 = vector.broadcast %3 : vector<1x128xf32> to vector<16x128xf32>
    %5 = arith.addf %2, %4 : vector<16x128xf32>
    %6 = arith.negf %5 : vector<16x128xf32>
    %7 = math.exp %6 : vector<16x128xf32>
    %cst_5 = arith.constant 1.000000e+00 : f32
    %8 = vector.broadcast %cst_5 : f32 to vector<16x128xf32>
    %9 = arith.addf %8, %7 : vector<16x128xf32>
    %10 = arith.divf %8, %9 : vector<16x128xf32>
    %11 = arith.mulf %5, %10 : vector<16x128xf32>
    %c0_6 = arith.constant 0 : index
    %c0_7 = arith.constant 0 : index
    %12 = vector.load %arg4[%c0_6, %c0_7] : memref<128x128xf32, #tpu.memory_space<vmem>>, vector<128x128xf32>
    %cst_8 = arith.constant dense<0.000000e+00> : vector<16x128xf32>
    %13 = tpu.matmul %11, %12, %cst_8 {dimension_numbers = #tpu.dot_dimension_numbers<[1], [0], [0], [1], [0, 0, 1, 1], [], []>} : vector<16x128xf32>, vector<128x128xf32>, vector<16x128xf32> -> vector<16x128xf32>
    %c0_9 = arith.constant 0 : index
    %c0_10 = arith.constant 0 : index
    %14 = vector.load %arg5[%c0_9, %c0_10] : memref<1x128xf32, #tpu.memory_space<vmem>>, vector<1x128xf32>
    %15 = vector.broadcast %14 : vector<1x128xf32> to vector<16x128xf32>
    %16 = arith.addf %13, %15 : vector<16x128xf32>
    %17 = arith.negf %16 : vector<16x128xf32>
    %18 = math.exp %17 : vector<16x128xf32>
    %cst_11 = arith.constant 1.000000e+00 : f32
    %19 = vector.broadcast %cst_11 : f32 to vector<16x128xf32>
    %20 = arith.addf %19, %18 : vector<16x128xf32>
    %21 = arith.divf %19, %20 : vector<16x128xf32>
    %22 = arith.mulf %16, %21 : vector<16x128xf32>
    %c0_12 = arith.constant 0 : index
    %c0_13 = arith.constant 0 : index
    %23 = vector.load %arg6[%c0_12, %c0_13] : memref<128x128xf32, #tpu.memory_space<vmem>>, vector<128x128xf32>
    %cst_14 = arith.constant dense<0.000000e+00> : vector<16x128xf32>
    %24 = tpu.matmul %22, %23, %cst_14 {dimension_numbers = #tpu.dot_dimension_numbers<[1], [0], [0], [1], [0, 0, 1, 1], [], []>} : vector<16x128xf32>, vector<128x128xf32>, vector<16x128xf32> -> vector<16x128xf32>
    %c0_15 = arith.constant 0 : index
    %c0_16 = arith.constant 0 : index
    %25 = vector.load %arg7[%c0_15, %c0_16] : memref<1x128xf32, #tpu.memory_space<vmem>>, vector<1x128xf32>
    %26 = vector.broadcast %25 : vector<1x128xf32> to vector<16x128xf32>
    %27 = arith.addf %24, %26 : vector<16x128xf32>
    %c0_17 = arith.constant 0 : index
    %c0_18 = arith.constant 0 : index
    %28 = vector.load %arg8[%c0_17, %c0_18] : memref<16x128xf32, #tpu.memory_space<vmem>>, vector<16x128xf32>
    tpu.vector_store %arg8[%c0_17, %c0_18], %27 {strides = array<i32>} : memref<16x128xf32, #tpu.memory_space<vmem>>, vector<16x128xf32>,
    return
  }
  func.func @transform_0(%arg0: i32) -> (i32, i32) {
    %c0_i32 = arith.constant 0 : i32
    %c0_i32_0 = arith.constant 0 : i32
    return %arg0, %c0_i32 : i32, i32
  }
  func.func @transform_1(%arg0: i32) -> (i32, i32) {
    %c0_i32 = arith.constant 0 : i32
    %c0_i32_0 = arith.constant 0 : i32
    %c0_i32_1 = arith.constant 0 : i32
    return %c0_i32, %c0_i32_0 : i32, i32
  }
  func.func @transform_2(%arg0: i32) -> (i32, i32) {
    %c0_i32 = arith.constant 0 : i32
    %c0_i32_0 = arith.constant 0 : i32
    %c0_i32_1 = arith.constant 0 : i32
    return %c0_i32, %c0_i32_0 : i32, i32
  }
  func.func @transform_3(%arg0: i32) -> (i32, i32) {
    %c0_i32 = arith.constant 0 : i32
    %c0_i32_0 = arith.constant 0 : i32
    %c0_i32_1 = arith.constant 0 : i32
    return %c0_i32, %c0_i32_0 : i32, i32
  }
  func.func @transform_4(%arg0: i32) -> (i32, i32) {
    %c0_i32 = arith.constant 0 : i32
    %c0_i32_0 = arith.constant 0 : i32
    %c0_i32_1 = arith.constant 0 : i32
    return %c0_i32, %c0_i32_0 : i32, i32
  }
  func.func @transform_5(%arg0: i32) -> (i32, i32) {
    %c0_i32 = arith.constant 0 : i32
    %c0_i32_0 = arith.constant 0 : i32
    %c0_i32_1 = arith.constant 0 : i32
    return %c0_i32, %c0_i32_0 : i32, i32
  }
  func.func @transform_6(%arg0: i32) -> (i32, i32) {
    %c0_i32 = arith.constant 0 : i32
    %c0_i32_0 = arith.constant 0 : i32
    %c0_i32_1 = arith.constant 0 : i32
    return %c0_i32, %c0_i32_0 : i32, i32
  }
  func.func @transform_7(%arg0: i32) -> (i32, i32) {
    %c0_i32 = arith.constant 0 : i32
    %c0_i32_0 = arith.constant 0 : i32
    return %arg0, %c0_i32 : i32, i32
  }
}

module attributes {stable_mosaic.version = 11 : i64} {
  func.func @mlp_kernel(%arg0: i32, %arg1: memref<16x128xf32, #tpu.memory_space<vmem>>, %arg2: memref<128x128xf32, #tpu.memory_space<vmem>>, %arg3: memref<1x128xf32, #tpu.memory_space<vmem>>, %arg4: memref<128x128xf32, #tpu.memory_space<vmem>>, %arg5: memref<1x128xf32, #tpu.memory_space<vmem>>, %arg6: memref<128x128xf32, #tpu.memory_space<vmem>>, %arg7: memref<1x128xf32, #tpu.memory_space<vmem>>, %arg8: memref<16x128xf32, #tpu.memory_space<vmem>>) attributes {dimension_semantics = [#tpu.dimension_semantics<parallel>], iteration_bounds = array<i64: 1>, scalar_prefetch = 0 : i64, scratch_operands = 0 : i64, tpu.core_type = #tpu.core_type<tc>, window_params = [{transform_indices = @transform_0, window_bounds = array<i64: 16, 128>}, {pipeline_mode = #tpu.pipeline_mode<synchronous>, transform_indices = @transform_1, window_bounds = array<i64: 128, 128>}, {pipeline_mode = #tpu.pipeline_mode<synchronous>, transform_indices = @transform_2, window_bounds = array<i64: 1, 128>}, {pipeline_mode = #tpu.pipeline_mode<synchronous>, transform_indices = @transform_3, window_bounds = array<i64: 128, 128>}, {pipeline_mode = #tpu.pipeline_mode<synchronous>, transform_indices = @transform_4, window_bounds = array<i64: 1, 128>}, {pipeline_mode = #tpu.pipeline_mode<synchronous>, transform_indices = @transform_5, window_bounds = array<i64: 128, 128>}, {pipeline_mode = #tpu.pipeline_mode<synchronous>, transform_indices = @transform_6, window_bounds = array<i64: 1, 128>}, {transform_indices = @transform_7, window_bounds = array<i64: 16, 128>}]} {
    %c0 = arith.constant 0 : index
    %c0_0 = arith.constant 0 : index
    %0 = vector.load %arg1[%c0, %c0_0] : memref<16x128xf32, #tpu.memory_space<vmem>>, vector<16x128xf32>
    %c0_1 = arith.constant 0 : index
    %c0_2 = arith.constant 0 : index
    %1 = vector.load %arg2[%c0_1, %c0_2] : memref<128x128xf32, #tpu.memory_space<vmem>>, vector<128x128xf32>
    %cst = arith.constant dense<0.000000e+00> : vector<16x128xf32>
    %2 = tpu.matmul %0, %1, %cst {dimension_numbers = #tpu.dot_dimension_numbers<[1], [0], [0], [1], [0, 0, 1, 1], [], []>} : vector<16x128xf32>, vector<128x128xf32>, vector<16x128xf32> -> vector<16x128xf32>
    %c0_3 = arith.constant 0 : index
    %c0_4 = arith.constant 0 : index
    %3 = vector.load %arg3[%c0_3, %c0_4] : memref<1x128xf32, #tpu.memory_space<vmem>>, vector<1x128xf32>
    %4 = vector.broadcast %3 : vector<1x128xf32> to vector<16x128xf32>
    %5 = arith.addf %2, %4 : vector<16x128xf32>
    %6 = arith.negf %5 : vector<16x128xf32>
    %7 = math.exp %6 : vector<16x128xf32>
    %cst_5 = arith.constant 1.000000e+00 : f32
    %8 = vector.broadcast %cst_5 : f32 to vector<16x128xf32>
    %9 = arith.addf %8, %7 : vector<16x128xf32>
    %10 = arith.divf %8, %9 : vector<16x128xf32>
    %11 = arith.mulf %5, %10 : vector<16x128xf32>
    %c0_6 = arith.constant 0 : index
    %c0_7 = arith.constant 0 : index
    %12 = vector.load %arg4[%c0_6, %c0_7] : memref<128x128xf32, #tpu.memory_space<vmem>>, vector<128x128xf32>
    %cst_8 = arith.constant dense<0.000000e+00> : vector<16x128xf32>
    %13 = tpu.matmul %11, %12, %cst_8 {dimension_numbers = #tpu.dot_dimension_numbers<[1], [0], [0], [1], [0, 0, 1, 1], [], []>} : vector<16x128xf32>, vector<128x128xf32>, vector<16x128xf32> -> vector<16x128xf32>
    %c0_9 = arith.constant 0 : index
    %c0_10 = arith.constant 0 : index
    %14 = vector.load %arg5[%c0_9, %c0_10] : memref<1x128xf32, #tpu.memory_space<vmem>>, vector<1x128xf32>
    %15 = vector.broadcast %14 : vector<1x128xf32> to vector<16x128xf32>
    %16 = arith.addf %13, %15 : vector<16x128xf32>
    %17 = arith.negf %16 : vector<16x128xf32>
    %18 = math.exp %17 : vector<16x128xf32>
    %cst_11 = arith.constant 1.000000e+00 : f32
    %19 = vector.broadcast %cst_11 : f32 to vector<16x128xf32>
    %20 = arith.addf %19, %18 : vector<16x128xf32>
    %21 = arith.divf %19, %20 : vector<16x128xf32>
    %22 = arith.mulf %16, %21 : vector<16x128xf32>
    %c0_12 = arith.constant 0 : index
    %c0_13 = arith.constant 0 : index
    %23 = vector.load %arg6[%c0_12, %c0_13] : memref<128x128xf32, #tpu.memory_space<vmem>>, vector<128x128xf32>
    %cst_14 = arith.constant dense<0.000000e+00> : vector<16x128xf32>
    %24 = tpu.matmul %22, %23, %cst_14 {dimension_numbers = #tpu.dot_dimension_numbers<[1], [0], [0], [1], [0, 0, 1, 1], [], []>} : vector<16x128xf32>, vector<128x128xf32>, vector<16x128xf32> -> vector<16x128xf32>
    %c0_15 = arith.constant 0 : index
    %c0_16 = arith.constant 0 : index
    %25 = vector.load %arg7[%c0_15, %c0_16] : memref<1x128xf32, #tpu.memory_space<vmem>>, vector<1x128xf32>
    %26 = vector.broadcast %25 : vector<1x128xf32> to vector<16x128xf32>
    %27 = arith.addf %24, %26 : vector<16x128xf32>
    %c0_17 = arith.constant 0 : index
    %c0_18 = arith.constant 0 : index
    %28 = vector.load %arg8[%c0_17, %c0_18] : memref<16x128xf32, #tpu.memory_space<vmem>>, vector<16x128xf32>
    tpu.vector_store %arg8[%c0_17, %c0_18], %27 {strides = array<i32>} : memref<16x128xf32, #tpu.memory_space<vmem>>, vector<16x128xf32>,
    return
  }
  func.func @transform_0(%arg0: i32) -> (i32, i32) {
    %c0_i32 = arith.constant 0 : i32
    %c0_i32_0 = arith.constant 0 : i32
    return %arg0, %c0_i32 : i32, i32
  }
  func.func @transform_1(%arg0: i32) -> (i32, i32) {
    %c0_i32 = arith.constant 0 : i32
    %c0_i32_0 = arith.constant 0 : i32
    %c0_i32_1 = arith.constant 0 : i32
    return %c0_i32, %c0_i32_0 : i32, i32
  }
  func.func @transform_2(%arg0: i32) -> (i32, i32) {
    %c0_i32 = arith.constant 0 : i32
    %c0_i32_0 = arith.constant 0 : i32
    %c0_i32_1 = arith.constant 0 : i32
    return %c0_i32, %c0_i32_0 : i32, i32
  }
  func.func @transform_3(%arg0: i32) -> (i32, i32) {
    %c0_i32 = arith.constant 0 : i32
    %c0_i32_0 = arith.constant 0 : i32
    %c0_i32_1 = arith.constant 0 : i32
    return %c0_i32, %c0_i32_0 : i32, i32
  }
  func.func @transform_4(%arg0: i32) -> (i32, i32) {
    %c0_i32 = arith.constant 0 : i32
    %c0_i32_0 = arith.constant 0 : i32
    %c0_i32_1 = arith.constant 0 : i32
    return %c0_i32, %c0_i32_0 : i32, i32
  }
  func.func @transform_5(%arg0: i32) -> (i32, i32) {
    %c0_i32 = arith.constant 0 : i32
    %c0_i32_0 = arith.constant 0 : i32
    %c0_i32_1 = arith.constant 0 : i32
    return %c0_i32, %c0_i32_0 : i32, i32
  }
  func.func @transform_6(%arg0: i32) -> (i32, i32) {
    %c0_i32 = arith.constant 0 : i32
    %c0_i32_0 = arith.constant 0 : i32
    %c0_i32_1 = arith.constant 0 : i32
    return %c0_i32, %c0_i32_0 : i32, i32
  }
  func.func @transform_7(%arg0: i32) -> (i32, i32) {
    %c0_i32 = arith.constant 0 : i32
    %c0_i32_0 = arith.constant 0 : i32
    return %arg0, %c0_i32 : i32, i32
  }
}

</mosaic_0001>

<llo_original>
// kernel: mlp_forward.1
$region0: #{mlp_forward.1}
  #allocation0 [shape = 'u32[]', space=smem, size = 0x4, offset = 0x4, fixed_abs, tag = 'smem constant byte address 0x4 - core index']
  #allocation1 [shape = 'u32[144,128]{1,0:T(1,128)}', space=vmem, size = 0x12000, scoped, tag = 'internal scratch']
  %s0 = inlined_call_operand.vmem [shape: f32[16,128], index: 0, kind: input, shape index: {}]
  %s1 = inlined_call_operand.vmem [shape: f32[128,128], index: 1, kind: input, shape index: {}]
  %s2 = inlined_call_operand.vmem [shape: f32[1,128], index: 2, kind: input, shape index: {}]
  %s3 = inlined_call_operand.vmem [shape: f32[128,128], index: 3, kind: input, shape index: {}]
  %s4 = inlined_call_operand.vmem [shape: f32[1,128], index: 4, kind: input, shape index: {}]
  %s5 = inlined_call_operand.vmem [shape: f32[128,128], index: 5, kind: input, shape index: {}]
  %s6 = inlined_call_operand.vmem [shape: f32[1,128], index: 6, kind: input, shape index: {}]
  %s7 = inlined_call_operand.vmem [shape: f32[16,128], index: 7, kind: output, shape index: {}]
  %s8 = sld [smem:[#allocation0]]
  $region38: #{mlp_forward.1} parent=0
    _
  %s10 = ssub.s32 1, %s8
  %s11 = scalar_select 0, %s10, %s8
  // Predicated region
  $region2: #{mlp_forward.1} parent=0 // pred_check
    _
  $region3: #{mlp_forward.1} parent=0 // pred_check_branch
    %13 = sbr.rel (0) target = $region5
  $region4: #{mlp_forward.1} parent=0 // pred_region
    _
  $region5: #{mlp_forward.1} parent=0 // pred_fallthru
    _
  // Predicated region
  $region6: #{mlp_forward.1} parent=0 // pred_check
    _
  $region7: #{mlp_forward.1} parent=0 // pred_check_branch
    %15 = sbr.rel (0) target = $region9
  $region8: #{mlp_forward.1} parent=0 // pred_region
    _
  $region9: #{mlp_forward.1} parent=0 // pred_fallthru
    _
  // Predicated region
  $region10: #{mlp_forward.1} parent=0 // pred_check
    _
  $region11: #{mlp_forward.1} parent=0 // pred_check_branch
    %17 = sbr.rel (0) target = $region13
  $region12: #{mlp_forward.1} parent=0 // pred_region
    _
  $region13: #{mlp_forward.1} parent=0 // pred_fallthru
    _
  // Predicated region
  $region14: #{mlp_forward.1} parent=0 // pred_check
    _
  $region15: #{mlp_forward.1} parent=0 // pred_check_branch
    %19 = sbr.rel (0) target = $region17
  $region16: #{mlp_forward.1} parent=0 // pred_region
    _
  $region17: #{mlp_forward.1} parent=0 // pred_fallthru
    _
  // Predicated region
  $region18: #{mlp_forward.1} parent=0 // pred_check
    _
  $region19: #{mlp_forward.1} parent=0 // pred_check_branch
    %21 = sbr.rel (0) target = $region21
  $region20: #{mlp_forward.1} parent=0 // pred_region
    _
  $region21: #{mlp_forward.1} parent=0 // pred_fallthru
    _
  // Predicated region
  $region22: #{mlp_forward.1} parent=0 // pred_check
    _
  $region23: #{mlp_forward.1} parent=0 // pred_check_branch
    %23 = sbr.rel (0) target = $region25
  $region24: #{mlp_forward.1} parent=0 // pred_region
    _
  $region25: #{mlp_forward.1} parent=0 // pred_fallthru
    _
  // Predicated region
  $region26: #{mlp_forward.1} parent=0 // pred_check
    _
  $region27: #{mlp_forward.1} parent=0 // pred_check_branch
    %25 = sbr.rel (0) target = $region29
  $region28: #{mlp_forward.1} parent=0 // pred_region
    _
  $region29: #{mlp_forward.1} parent=0 // pred_fallthru
    _
  %v26 = vld [vmem:[%s0] sm:$0xff]
  %v27 = vld [vmem:[%s0 + $0x8] sm:$0xff]
  %v28 = vld [vmem:[%s1] sm:$0xff]
  %v29 = vld [vmem:[%s1 + $0x8] sm:$0xff]
  %v30 = vld [vmem:[%s1 + $0x10] sm:$0xff]
  %v31 = vld [vmem:[%s1 + $0x18] sm:$0xff]
  %v32 = vld [vmem:[%s1 + $0x20] sm:$0xff]
  %v33 = vld [vmem:[%s1 + $0x28] sm:$0xff]
  %v34 = vld [vmem:[%s1 + $0x30] sm:$0xff]
  %v35 = vld [vmem:[%s1 + $0x38] sm:$0xff]
  %v36 = vld [vmem:[%s1 + $0x40] sm:$0xff]
  %v37 = vld [vmem:[%s1 + $0x48] sm:$0xff]
  %v38 = vld [vmem:[%s1 + $0x50] sm:$0xff]
  %v39 = vld [vmem:[%s1 + $0x58] sm:$0xff]
  %v40 = vld [vmem:[%s1 + $0x60] sm:$0xff]
  %v41 = vld [vmem:[%s1 + $0x68] sm:$0xff]
  %v42 = vld [vmem:[%s1 + $0x70] sm:$0xff]
  %v43 = vld [vmem:[%s1 + $0x78] sm:$0xff]
  %v44 = vld [vmem:[%s2] sm:$0x1]
  %v46 = vlaneseq
  %v47 = vshrl.u32 %v46, 7
  %v48 = vsub.s32 0, %v47
  %v49 = vrot.slane %v44, %v48
  %51 = vmatprep.subr.mxu0 0.0
  %52 = vmatpush1.msra.mxu0 %v28
  %53 = vmatprep.subr.mxu0 0.0
  %54 = vmatpush1.msra.mxu0 %v29
  %55 = vmatprep.subr.mxu0 0.0
  %56 = vmatpush1.msra.mxu0 %v30
  %57 = vmatprep.subr.mxu0 0.0
  %58 = vmatpush1.msra.mxu0 %v31
  %59 = vmatprep.subr.mxu0 0.0
  %60 = vmatpush1.msra.mxu0 %v32
  %61 = vmatprep.subr.mxu0 0.0
  %62 = vmatpush1.msra.mxu0 %v33
  %63 = vmatprep.subr.mxu0 0.0
  %64 = vmatpush1.msra.mxu0 %v34
  %65 = vmatprep.subr.mxu0 0.0
  %66 = vmatpush1.msra.mxu0 %v35
  %67 = vmatprep.subr.mxu0 0.0
  %68 = vmatpush1.msra.mxu0 %v36
  %69 = vmatprep.subr.mxu0 0.0
  %70 = vmatpush1.msra.mxu0 %v37
  %71 = vmatprep.subr.mxu0 0.0
  %72 = vmatpush1.msra.mxu0 %v38
  %73 = vmatprep.subr.mxu0 0.0
  %74 = vmatpush1.msra.mxu0 %v39
  %75 = vmatprep.subr.mxu0 0.0
  %76 = vmatpush1.msra.mxu0 %v40
  %77 = vmatprep.subr.mxu0 0.0
  %78 = vmatpush1.msra.mxu0 %v41
  %79 = vmatprep.subr.mxu0 0.0
  %80 = vmatpush1.msra.mxu0 %v42
  %81 = vmatprep.subr.mxu0 0.0
  %82 = vmatpush1.msra.mxu0 %v43
  %83 = vmatprep.subr.mxu0 0.0
  %84 = vmatpush1.msra.mxu0 0.0
  %85 = vmatprep.subr.mxu0 0.0
  %86 = vmatpush1.msra.mxu0 0.0
  %87 = vmatprep.subr.mxu0 0.0
  %88 = vmatpush1.msra.mxu0 0.0
  %89 = vmatprep.subr.mxu0 0.0
  %90 = vmatpush1.msra.mxu0 0.0
  %91 = vmatprep.subr.mxu0 0.0
  %92 = vmatpush1.msra.mxu0 0.0
  %93 = vmatprep.subr.mxu0 0.0
  %94 = vmatpush1.msra.mxu0 0.0
  %95 = vmatprep.subr.mxu0 0.0
  %96 = vmatpush1.msra.mxu0 0.0
  %97 = vmatprep.subr.mxu0 0.0
  %98 = vmatpush1.msra.mxu0 0.0
  %99 = vmatprep.subr.mxu0 0.0
  %100 = vmatpush1.msra.mxu0 0.0
  %101 = vmatprep.subr.mxu0 0.0
  %102 = vmatpush1.msra.mxu0 0.0
  %103 = vmatprep.subr.mxu0 0.0
  %104 = vmatpush1.msra.mxu0 0.0
  %105 = vmatprep.subr.mxu0 0.0
  %106 = vmatpush1.msra.mxu0 0.0
  %107 = vmatprep.subr.mxu0 0.0
  %108 = vmatpush1.msra.mxu0 0.0
  %109 = vmatprep.subr.mxu0 0.0
  %110 = vmatpush1.msra.mxu0 0.0
  %111 = vmatprep.subr.mxu0 0.0
  %112 = vmatpush1.msra.mxu0 0.0
  %113 = vmatprep.subr.mxu0 0.0
  %114 = vmatpush1.msra.mxu0 0.0
  %115 = vmatprep.mubr.f32.mxu0 0.0
  %116 = vmatmul.mubr.f32.gmra.mrb[0].mxu0 %v26
  %v117 = vpop.f32.mrb[0].mxu0
  %v118 = vadd.f32 %v49, %v117
  %v119 = vpop.f32.mrb[0].mxu0
  %120 = vmatprep.mubr.f32.mxu0 0.0
  %121 = vmatmul.mubr.f32.gmra.mrb[0].mxu0 %v27
  %v122 = vpop.f32.mrb[0].mxu0
  %v123 = vadd.f32 %v49, %v122
  %v124 = vpop.f32.mrb[0].mxu0
  %125 = vdwg.mxu0
  %v126 = vxor.u32 %v118, 2147483648
  %v127 = vxor.u32 %v123, 2147483648
  %v128 = vmul.f32 %v126, 1.442695
  %v129 = vpow.pop %v128
  %v130 = vmul.f32 %v127, 1.442695
  %v131 = vpow.pop %v130
  %v132 = vadd.f32 %v129, 1.0
  %v133 = vadd.f32 %v131, 1.0
  %v134 = vrcp.pop %v132
  %v135 = vmul.f32 1.0, %v134
  %v136 = vrcp.pop %v133
  %v137 = vmul.f32 1.0, %v136
  %v138 = vmul.f32 %v118, %v135
  %v139 = vmul.f32 %v123, %v137
  %v140 = vld [vmem:[%s3] sm:$0xff]
  %v141 = vld [vmem:[%s3 + $0x8] sm:$0xff]
  %v142 = vld [vmem:[%s3 + $0x10] sm:$0xff]
  %v143 = vld [vmem:[%s3 + $0x18] sm:$0xff]
  %v144 = vld [vmem:[%s3 + $0x20] sm:$0xff]
  %v145 = vld [vmem:[%s3 + $0x28] sm:$0xff]
  %v146 = vld [vmem:[%s3 + $0x30] sm:$0xff]
  %v147 = vld [vmem:[%s3 + $0x38] sm:$0xff]
  %v148 = vld [vmem:[%s3 + $0x40] sm:$0xff]
  %v149 = vld [vmem:[%s3 + $0x48] sm:$0xff]
  %v150 = vld [vmem:[%s3 + $0x50] sm:$0xff]
  %v151 = vld [vmem:[%s3 + $0x58] sm:$0xff]
  %v152 = vld [vmem:[%s3 + $0x60] sm:$0xff]
  %v153 = vld [vmem:[%s3 + $0x68] sm:$0xff]
  %v154 = vld [vmem:[%s3 + $0x70] sm:$0xff]
  %v155 = vld [vmem:[%s3 + $0x78] sm:$0xff]
  %v156 = vld [vmem:[%s4] sm:$0x1]
  %v158 = vlaneseq
  %v159 = vshrl.u32 %v158, 7
  %v160 = vsub.s32 0, %v159
  %v161 = vrot.slane %v156, %v160
  %163 = vmatprep.subr.mxu0 0.0
  %164 = vmatpush1.msra.mxu0 %v140
  %165 = vmatprep.subr.mxu0 0.0
  %166 = vmatpush1.msra.mxu0 %v141
  %167 = vmatprep.subr.mxu0 0.0
  %168 = vmatpush1.msra.mxu0 %v142
  %169 = vmatprep.subr.mxu0 0.0
  %170 = vmatpush1.msra.mxu0 %v143
  %171 = vmatprep.subr.mxu0 0.0
  %172 = vmatpush1.msra.mxu0 %v144
  %173 = vmatprep.subr.mxu0 0.0
  %174 = vmatpush1.msra.mxu0 %v145
  %175 = vmatprep.subr.mxu0 0.0
  %176 = vmatpush1.msra.mxu0 %v146
  %177 = vmatprep.subr.mxu0 0.0
  %178 = vmatpush1.msra.mxu0 %v147
  %179 = vmatprep.subr.mxu0 0.0
  %180 = vmatpush1.msra.mxu0 %v148
  %181 = vmatprep.subr.mxu0 0.0
  %182 = vmatpush1.msra.mxu0 %v149
  %183 = vmatprep.subr.mxu0 0.0
  %184 = vmatpush1.msra.mxu0 %v150
  %185 = vmatprep.subr.mxu0 0.0
  %186 = vmatpush1.msra.mxu0 %v151
  %187 = vmatprep.subr.mxu0 0.0
  %188 = vmatpush1.msra.mxu0 %v152
  %189 = vmatprep.subr.mxu0 0.0
  %190 = vmatpush1.msra.mxu0 %v153
  %191 = vmatprep.subr.mxu0 0.0
  %192 = vmatpush1.msra.mxu0 %v154
  %193 = vmatprep.subr.mxu0 0.0
  %194 = vmatpush1.msra.mxu0 %v155
  %195 = vmatprep.subr.mxu0 0.0
  %196 = vmatpush1.msra.mxu0 0.0
  %197 = vmatprep.subr.mxu0 0.0
  %198 = vmatpush1.msra.mxu0 0.0
  %199 = vmatprep.subr.mxu0 0.0
  %200 = vmatpush1.msra.mxu0 0.0
  %201 = vmatprep.subr.mxu0 0.0
  %202 = vmatpush1.msra.mxu0 0.0
  %203 = vmatprep.subr.mxu0 0.0
  %204 = vmatpush1.msra.mxu0 0.0
  %205 = vmatprep.subr.mxu0 0.0
  %206 = vmatpush1.msra.mxu0 0.0
  %207 = vmatprep.subr.mxu0 0.0
  %208 = vmatpush1.msra.mxu0 0.0
  %209 = vmatprep.subr.mxu0 0.0
  %210 = vmatpush1.msra.mxu0 0.0
  %211 = vmatprep.subr.mxu0 0.0
  %212 = vmatpush1.msra.mxu0 0.0
  %213 = vmatprep.subr.mxu0 0.0
  %214 = vmatpush1.msra.mxu0 0.0
  %215 = vmatprep.subr.mxu0 0.0
  %216 = vmatpush1.msra.mxu0 0.0
  %217 = vmatprep.subr.mxu0 0.0
  %218 = vmatpush1.msra.mxu0 0.0
  %219 = vmatprep.subr.mxu0 0.0
  %220 = vmatpush1.msra.mxu0 0.0
  %221 = vmatprep.subr.mxu0 0.0
  %222 = vmatpush1.msra.mxu0 0.0
  %223 = vmatprep.subr.mxu0 0.0
  %224 = vmatpush1.msra.mxu0 0.0
  %225 = vmatprep.subr.mxu0 0.0
  %226 = vmatpush1.msra.mxu0 0.0
  %227 = vmatprep.mubr.f32.mxu0 0.0
  %228 = vmatmul.mubr.f32.gmra.mrb[0].mxu0 %v138
  %v229 = vpop.f32.mrb[0].mxu0
  %v230 = vadd.f32 %v161, %v229
  %v231 = vpop.f32.mrb[0].mxu0
  %232 = vmatprep.mubr.f32.mxu0 0.0
  %233 = vmatmul.mubr.f32.gmra.mrb[0].mxu0 %v139
  %v234 = vpop.f32.mrb[0].mxu0
  %v235 = vadd.f32 %v161, %v234
  %v236 = vpop.f32.mrb[0].mxu0
  %237 = vdwg.mxu0
  %v238 = vxor.u32 %v230, 2147483648
  %v239 = vxor.u32 %v235, 2147483648
  %v240 = vmul.f32 %v238, 1.442695
  %v241 = vpow.pop %v240
  %v242 = vmul.f32 %v239, 1.442695
  %v243 = vpow.pop %v242
  %v244 = vadd.f32 %v241, 1.0
  %v245 = vadd.f32 %v243, 1.0
  %v246 = vrcp.pop %v244
  %v247 = vmul.f32 1.0, %v246
  %v248 = vrcp.pop %v245
  %v249 = vmul.f32 1.0, %v248
  %v250 = vmul.f32 %v230, %v247
  %v251 = vmul.f32 %v235, %v249
  %v252 = vld [vmem:[%s5] sm:$0xff]
  %v253 = vld [vmem:[%s5 + $0x8] sm:$0xff]
  %v254 = vld [vmem:[%s5 + $0x10] sm:$0xff]
  %v255 = vld [vmem:[%s5 + $0x18] sm:$0xff]
  %v256 = vld [vmem:[%s5 + $0x20] sm:$0xff]
  %v257 = vld [vmem:[%s5 + $0x28] sm:$0xff]
  %v258 = vld [vmem:[%s5 + $0x30] sm:$0xff]
  %v259 = vld [vmem:[%s5 + $0x38] sm:$0xff]
  %v260 = vld [vmem:[%s5 + $0x40] sm:$0xff]
  %v261 = vld [vmem:[%s5 + $0x48] sm:$0xff]
  %v262 = vld [vmem:[%s5 + $0x50] sm:$0xff]
  %v263 = vld [vmem:[%s5 + $0x58] sm:$0xff]
  %v264 = vld [vmem:[%s5 + $0x60] sm:$0xff]
  %v265 = vld [vmem:[%s5 + $0x68] sm:$0xff]
  %v266 = vld [vmem:[%s5 + $0x70] sm:$0xff]
  %v267 = vld [vmem:[%s5 + $0x78] sm:$0xff]
  %v268 = vld [vmem:[%s6] sm:$0x1]
  %v270 = vlaneseq
  %v271 = vshrl.u32 %v270, 7
  %v272 = vsub.s32 0, %v271
  %v273 = vrot.slane %v268, %v272
  %275 = vmatprep.subr.mxu0 0.0
  %276 = vmatpush1.msra.mxu0 %v252
  %277 = vmatprep.subr.mxu0 0.0
  %278 = vmatpush1.msra.mxu0 %v253
  %279 = vmatprep.subr.mxu0 0.0
  %280 = vmatpush1.msra.mxu0 %v254
  %281 = vmatprep.subr.mxu0 0.0
  %282 = vmatpush1.msra.mxu0 %v255
  %283 = vmatprep.subr.mxu0 0.0
  %284 = vmatpush1.msra.mxu0 %v256
  %285 = vmatprep.subr.mxu0 0.0
  %286 = vmatpush1.msra.mxu0 %v257
  %287 = vmatprep.subr.mxu0 0.0
  %288 = vmatpush1.msra.mxu0 %v258
  %289 = vmatprep.subr.mxu0 0.0
  %290 = vmatpush1.msra.mxu0 %v259
  %291 = vmatprep.subr.mxu0 0.0
  %292 = vmatpush1.msra.mxu0 %v260
  %293 = vmatprep.subr.mxu0 0.0
  %294 = vmatpush1.msra.mxu0 %v261
  %295 = vmatprep.subr.mxu0 0.0
  %296 = vmatpush1.msra.mxu0 %v262
  %297 = vmatprep.subr.mxu0 0.0
  %298 = vmatpush1.msra.mxu0 %v263
  %299 = vmatprep.subr.mxu0 0.0
  %300 = vmatpush1.msra.mxu0 %v264
  %301 = vmatprep.subr.mxu0 0.0
  %302 = vmatpush1.msra.mxu0 %v265
  %303 = vmatprep.subr.mxu0 0.0
  %304 = vmatpush1.msra.mxu0 %v266
  %305 = vmatprep.subr.mxu0 0.0
  %306 = vmatpush1.msra.mxu0 %v267
  %307 = vmatprep.subr.mxu0 0.0
  %308 = vmatpush1.msra.mxu0 0.0
  %309 = vmatprep.subr.mxu0 0.0
  %310 = vmatpush1.msra.mxu0 0.0
  %311 = vmatprep.subr.mxu0 0.0
  %312 = vmatpush1.msra.mxu0 0.0
  %313 = vmatprep.subr.mxu0 0.0
  %314 = vmatpush1.msra.mxu0 0.0
  %315 = vmatprep.subr.mxu0 0.0
  %316 = vmatpush1.msra.mxu0 0.0
  %317 = vmatprep.subr.mxu0 0.0
  %318 = vmatpush1.msra.mxu0 0.0
  %319 = vmatprep.subr.mxu0 0.0
  %320 = vmatpush1.msra.mxu0 0.0
  %321 = vmatprep.subr.mxu0 0.0
  %322 = vmatpush1.msra.mxu0 0.0
  %323 = vmatprep.subr.mxu0 0.0
  %324 = vmatpush1.msra.mxu0 0.0
  %325 = vmatprep.subr.mxu0 0.0
  %326 = vmatpush1.msra.mxu0 0.0
  %327 = vmatprep.subr.mxu0 0.0
  %328 = vmatpush1.msra.mxu0 0.0
  %329 = vmatprep.subr.mxu0 0.0
  %330 = vmatpush1.msra.mxu0 0.0
  %331 = vmatprep.subr.mxu0 0.0
  %332 = vmatpush1.msra.mxu0 0.0
  %333 = vmatprep.subr.mxu0 0.0
  %334 = vmatpush1.msra.mxu0 0.0
  %335 = vmatprep.subr.mxu0 0.0
  %336 = vmatpush1.msra.mxu0 0.0
  %337 = vmatprep.subr.mxu0 0.0
  %338 = vmatpush1.msra.mxu0 0.0
  %339 = vmatprep.mubr.f32.mxu0 0.0
  %340 = vmatmul.mubr.f32.gmra.mrb[0].mxu0 %v250
  %v341 = vpop.f32.mrb[0].mxu0
  %v342 = vadd.f32 %v273, %v341
  %v343 = vpop.f32.mrb[0].mxu0
  %344 = vmatprep.mubr.f32.mxu0 0.0
  %345 = vmatmul.mubr.f32.gmra.mrb[0].mxu0 %v251
  %v346 = vpop.f32.mrb[0].mxu0
  %v347 = vadd.f32 %v273, %v346
  %v348 = vpop.f32.mrb[0].mxu0
  %349 = vdwg.mxu0
  %350 = vst [vmem:[%s7] sm:$0xff] %v342
  %351 = vst [vmem:[%s7 + $0x8] sm:$0xff] %v347
  // Predicated region
  $region30: #{mlp_forward.1} parent=0 // pred_check
    _
  $region31: #{mlp_forward.1} parent=0 // pred_check_branch
    %353 = sbr.rel (0) target = $region33
  $region32: #{mlp_forward.1} parent=0 // pred_region
    _
  $region33: #{mlp_forward.1} parent=0 // pred_fallthru
    _
  // Predicated region
  $region34: #{mlp_forward.1} parent=0 // pred_check
    _
  $region35: #{mlp_forward.1} parent=0 // pred_check_branch
    %355 = sbr.rel (0) target = $region37
  $region36: #{mlp_forward.1} parent=0 // pred_region
    _
  $region37: #{mlp_forward.1} parent=0 // pred_fallthru
    _

// kernel: mlp_forward.1
$region0: #{mlp_forward.1}
  #allocation0 [shape = 'u32[]', space=smem, size = 0x4, offset = 0x4, fixed_abs, tag = 'smem constant byte address 0x4 - core index']
  #allocation1 [shape = 'u32[144,128]{1,0:T(1,128)}', space=vmem, size = 0x12000, scoped, tag = 'internal scratch']
  %s0 = inlined_call_operand.vmem [shape: f32[16,128], index: 0, kind: input, shape index: {}]
  %s1 = inlined_call_operand.vmem [shape: f32[128,128], index: 1, kind: input, shape index: {}]
  %s2 = inlined_call_operand.vmem [shape: f32[1,128], index: 2, kind: input, shape index: {}]
  %s3 = inlined_call_operand.vmem [shape: f32[128,128], index: 3, kind: input, shape index: {}]
  %s4 = inlined_call_operand.vmem [shape: f32[1,128], index: 4, kind: input, shape index: {}]
  %s5 = inlined_call_operand.vmem [shape: f32[128,128], index: 5, kind: input, shape index: {}]
  %s6 = inlined_call_operand.vmem [shape: f32[1,128], index: 6, kind: input, shape index: {}]
  %s7 = inlined_call_operand.vmem [shape: f32[16,128], index: 7, kind: output, shape index: {}]
  %s8 = sld [smem:[#allocation0]]
  $region38: #{mlp_forward.1} parent=0
    _
  %s10 = ssub.s32 1, %s8
  %s11 = scalar_select 0, %s10, %s8
  // Predicated region
  $region2: #{mlp_forward.1} parent=0 // pred_check
    _
  $region3: #{mlp_forward.1} parent=0 // pred_check_branch
    %13 = sbr.rel (0) target = $region5
  $region4: #{mlp_forward.1} parent=0 // pred_region
    _
  $region5: #{mlp_forward.1} parent=0 // pred_fallthru
    _
  // Predicated region
  $region6: #{mlp_forward.1} parent=0 // pred_check
    _
  $region7: #{mlp_forward.1} parent=0 // pred_check_branch
    %15 = sbr.rel (0) target = $region9
  $region8: #{mlp_forward.1} parent=0 // pred_region
    _
  $region9: #{mlp_forward.1} parent=0 // pred_fallthru
    _
  // Predicated region
  $region10: #{mlp_forward.1} parent=0 // pred_check
    _
  $region11: #{mlp_forward.1} parent=0 // pred_check_branch
    %17 = sbr.rel (0) target = $region13
  $region12: #{mlp_forward.1} parent=0 // pred_region
    _
  $region13: #{mlp_forward.1} parent=0 // pred_fallthru
    _
  // Predicated region
  $region14: #{mlp_forward.1} parent=0 // pred_check
    _
  $region15: #{mlp_forward.1} parent=0 // pred_check_branch
    %19 = sbr.rel (0) target = $region17
  $region16: #{mlp_forward.1} parent=0 // pred_region
    _
  $region17: #{mlp_forward.1} parent=0 // pred_fallthru
    _
  // Predicated region
  $region18: #{mlp_forward.1} parent=0 // pred_check
    _
  $region19: #{mlp_forward.1} parent=0 // pred_check_branch
    %21 = sbr.rel (0) target = $region21
  $region20: #{mlp_forward.1} parent=0 // pred_region
    _
  $region21: #{mlp_forward.1} parent=0 // pred_fallthru
    _
  // Predicated region
  $region22: #{mlp_forward.1} parent=0 // pred_check
    _
  $region23: #{mlp_forward.1} parent=0 // pred_check_branch
    %23 = sbr.rel (0) target = $region25
  $region24: #{mlp_forward.1} parent=0 // pred_region
    _
  $region25: #{mlp_forward.1} parent=0 // pred_fallthru
    _
  // Predicated region
  $region26: #{mlp_forward.1} parent=0 // pred_check
    _
  $region27: #{mlp_forward.1} parent=0 // pred_check_branch
    %25 = sbr.rel (0) target = $region29
  $region28: #{mlp_forward.1} parent=0 // pred_region
    _
  $region29: #{mlp_forward.1} parent=0 // pred_fallthru
    _
  %v26 = vld [vmem:[%s0] sm:$0xff]
  %v27 = vld [vmem:[%s0 + $0x8] sm:$0xff]
  %v28 = vld [vmem:[%s1] sm:$0xff]
  %v29 = vld [vmem:[%s1 + $0x8] sm:$0xff]
  %v30 = vld [vmem:[%s1 + $0x10] sm:$0xff]
  %v31 = vld [vmem:[%s1 + $0x18] sm:$0xff]
  %v32 = vld [vmem:[%s1 + $0x20] sm:$0xff]
  %v33 = vld [vmem:[%s1 + $0x28] sm:$0xff]
  %v34 = vld [vmem:[%s1 + $0x30] sm:$0xff]
  %v35 = vld [vmem:[%s1 + $0x38] sm:$0xff]
  %v36 = vld [vmem:[%s1 + $0x40] sm:$0xff]
  %v37 = vld [vmem:[%s1 + $0x48] sm:$0xff]
  %v38 = vld [vmem:[%s1 + $0x50] sm:$0xff]
  %v39 = vld [vmem:[%s1 + $0x58] sm:$0xff]
  %v40 = vld [vmem:[%s1 + $0x60] sm:$0xff]
  %v41 = vld [vmem:[%s1 + $0x68] sm:$0xff]
  %v42 = vld [vmem:[%s1 + $0x70] sm:$0xff]
  %v43 = vld [vmem:[%s1 + $0x78] sm:$0xff]
  %v44 = vld [vmem:[%s2] sm:$0x1]
  %v46 = vlaneseq
  %v47 = vshrl.u32 %v46, 7
  %v48 = vsub.s32 0, %v47
  %v49 = vrot.slane %v44, %v48
  %51 = vmatprep.subr.mxu0 0.0
  %52 = vmatpush1.msra.mxu0 %v28
  %53 = vmatprep.subr.mxu0 0.0
  %54 = vmatpush1.msra.mxu0 %v29
  %55 = vmatprep.subr.mxu0 0.0
  %56 = vmatpush1.msra.mxu0 %v30
  %57 = vmatprep.subr.mxu0 0.0
  %58 = vmatpush1.msra.mxu0 %v31
  %59 = vmatprep.subr.mxu0 0.0
  %60 = vmatpush1.msra.mxu0 %v32
  %61 = vmatprep.subr.mxu0 0.0
  %62 = vmatpush1.msra.mxu0 %v33
  %63 = vmatprep.subr.mxu0 0.0
  %64 = vmatpush1.msra.mxu0 %v34
  %65 = vmatprep.subr.mxu0 0.0
  %66 = vmatpush1.msra.mxu0 %v35
  %67 = vmatprep.subr.mxu0 0.0
  %68 = vmatpush1.msra.mxu0 %v36
  %69 = vmatprep.subr.mxu0 0.0
  %70 = vmatpush1.msra.mxu0 %v37
  %71 = vmatprep.subr.mxu0 0.0
  %72 = vmatpush1.msra.mxu0 %v38
  %73 = vmatprep.subr.mxu0 0.0
  %74 = vmatpush1.msra.mxu0 %v39
  %75 = vmatprep.subr.mxu0 0.0
  %76 = vmatpush1.msra.mxu0 %v40
  %77 = vmatprep.subr.mxu0 0.0
  %78 = vmatpush1.msra.mxu0 %v41
  %79 = vmatprep.subr.mxu0 0.0
  %80 = vmatpush1.msra.mxu0 %v42
  %81 = vmatprep.subr.mxu0 0.0
  %82 = vmatpush1.msra.mxu0 %v43
  %83 = vmatprep.subr.mxu0 0.0
  %84 = vmatpush1.msra.mxu0 0.0
  %85 = vmatprep.subr.mxu0 0.0
  %86 = vmatpush1.msra.mxu0 0.0
  %87 = vmatprep.subr.mxu0 0.0
  %88 = vmatpush1.msra.mxu0 0.0
  %89 = vmatprep.subr.mxu0 0.0
  %90 = vmatpush1.msra.mxu0 0.0
  %91 = vmatprep.subr.mxu0 0.0
  %92 = vmatpush1.msra.mxu0 0.0
  %93 = vmatprep.subr.mxu0 0.0
  %94 = vmatpush1.msra.mxu0 0.0
  %95 = vmatprep.subr.mxu0 0.0
  %96 = vmatpush1.msra.mxu0 0.0
  %97 = vmatprep.subr.mxu0 0.0
  %98 = vmatpush1.msra.mxu0 0.0
  %99 = vmatprep.subr.mxu0 0.0
  %100 = vmatpush1.msra.mxu0 0.0
  %101 = vmatprep.subr.mxu0 0.0
  %102 = vmatpush1.msra.mxu0 0.0
  %103 = vmatprep.subr.mxu0 0.0
  %104 = vmatpush1.msra.mxu0 0.0
  %105 = vmatprep.subr.mxu0 0.0
  %106 = vmatpush1.msra.mxu0 0.0
  %107 = vmatprep.subr.mxu0 0.0
  %108 = vmatpush1.msra.mxu0 0.0
  %109 = vmatprep.subr.mxu0 0.0
  %110 = vmatpush1.msra.mxu0 0.0
  %111 = vmatprep.subr.mxu0 0.0
  %112 = vmatpush1.msra.mxu0 0.0
  %113 = vmatprep.subr.mxu0 0.0
  %114 = vmatpush1.msra.mxu0 0.0
  %115 = vmatprep.mubr.f32.mxu0 0.0
  %116 = vmatmul.mubr.f32.gmra.mrb[0].mxu0 %v26
  %v117 = vpop.f32.mrb[0].mxu0
  %v118 = vadd.f32 %v49, %v117
  %v119 = vpop.f32.mrb[0].mxu0
  %120 = vmatprep.mubr.f32.mxu0 0.0
  %121 = vmatmul.mubr.f32.gmra.mrb[0].mxu0 %v27
  %v122 = vpop.f32.mrb[0].mxu0
  %v123 = vadd.f32 %v49, %v122
  %v124 = vpop.f32.mrb[0].mxu0
  %125 = vdwg.mxu0
  %v126 = vxor.u32 %v118, 2147483648
  %v127 = vxor.u32 %v123, 2147483648
  %v128 = vmul.f32 %v126, 1.442695
  %v129 = vpow.pop %v128
  %v130 = vmul.f32 %v127, 1.442695
  %v131 = vpow.pop %v130
  %v132 = vadd.f32 %v129, 1.0
  %v133 = vadd.f32 %v131, 1.0
  %v134 = vrcp.pop %v132
  %v135 = vmul.f32 1.0, %v134
  %v136 = vrcp.pop %v133
  %v137 = vmul.f32 1.0, %v136
  %v138 = vmul.f32 %v118, %v135
  %v139 = vmul.f32 %v123, %v137
  %v140 = vld [vmem:[%s3] sm:$0xff]
  %v141 = vld [vmem:[%s3 + $0x8] sm:$0xff]
  %v142 = vld [vmem:[%s3 + $0x10] sm:$0xff]
  %v143 = vld [vmem:[%s3 + $0x18] sm:$0xff]
  %v144 = vld [vmem:[%s3 + $0x20] sm:$0xff]
  %v145 = vld [vmem:[%s3 + $0x28] sm:$0xff]
  %v146 = vld [vmem:[%s3 + $0x30] sm:$0xff]
  %v147 = vld [vmem:[%s3 + $0x38] sm:$0xff]
  %v148 = vld [vmem:[%s3 + $0x40] sm:$0xff]
  %v149 = vld [vmem:[%s3 + $0x48] sm:$0xff]
  %v150 = vld [vmem:[%s3 + $0x50] sm:$0xff]
  %v151 = vld [vmem:[%s3 + $0x58] sm:$0xff]
  %v152 = vld [vmem:[%s3 + $0x60] sm:$0xff]
  %v153 = vld [vmem:[%s3 + $0x68] sm:$0xff]
  %v154 = vld [vmem:[%s3 + $0x70] sm:$0xff]
  %v155 = vld [vmem:[%s3 + $0x78] sm:$0xff]
  %v156 = vld [vmem:[%s4] sm:$0x1]
  %v158 = vlaneseq
  %v159 = vshrl.u32 %v158, 7
  %v160 = vsub.s32 0, %v159
  %v161 = vrot.slane %v156, %v160
  %163 = vmatprep.subr.mxu0 0.0
  %164 = vmatpush1.msra.mxu0 %v140
  %165 = vmatprep.subr.mxu0 0.0
  %166 = vmatpush1.msra.mxu0 %v141
  %167 = vmatprep.subr.mxu0 0.0
  %168 = vmatpush1.msra.mxu0 %v142
  %169 = vmatprep.subr.mxu0 0.0
  %170 = vmatpush1.msra.mxu0 %v143
  %171 = vmatprep.subr.mxu0 0.0
  %172 = vmatpush1.msra.mxu0 %v144
  %173 = vmatprep.subr.mxu0 0.0
  %174 = vmatpush1.msra.mxu0 %v145
  %175 = vmatprep.subr.mxu0 0.0
  %176 = vmatpush1.msra.mxu0 %v146
  %177 = vmatprep.subr.mxu0 0.0
  %178 = vmatpush1.msra.mxu0 %v147
  %179 = vmatprep.subr.mxu0 0.0
  %180 = vmatpush1.msra.mxu0 %v148
  %181 = vmatprep.subr.mxu0 0.0
  %182 = vmatpush1.msra.mxu0 %v149
  %183 = vmatprep.subr.mxu0 0.0
  %184 = vmatpush1.msra.mxu0 %v150
  %185 = vmatprep.subr.mxu0 0.0
  %186 = vmatpush1.msra.mxu0 %v151
  %187 = vmatprep.subr.mxu0 0.0
  %188 = vmatpush1.msra.mxu0 %v152
  %189 = vmatprep.subr.mxu0 0.0
  %190 = vmatpush1.msra.mxu0 %v153
  %191 = vmatprep.subr.mxu0 0.0
  %192 = vmatpush1.msra.mxu0 %v154
  %193 = vmatprep.subr.mxu0 0.0
  %194 = vmatpush1.msra.mxu0 %v155
  %195 = vmatprep.subr.mxu0 0.0
  %196 = vmatpush1.msra.mxu0 0.0
  %197 = vmatprep.subr.mxu0 0.0
  %198 = vmatpush1.msra.mxu0 0.0
  %199 = vmatprep.subr.mxu0 0.0
  %200 = vmatpush1.msra.mxu0 0.0
  %201 = vmatprep.subr.mxu0 0.0
  %202 = vmatpush1.msra.mxu0 0.0
  %203 = vmatprep.subr.mxu0 0.0
  %204 = vmatpush1.msra.mxu0 0.0
  %205 = vmatprep.subr.mxu0 0.0
  %206 = vmatpush1.msra.mxu0 0.0
  %207 = vmatprep.subr.mxu0 0.0
  %208 = vmatpush1.msra.mxu0 0.0
  %209 = vmatprep.subr.mxu0 0.0
  %210 = vmatpush1.msra.mxu0 0.0
  %211 = vmatprep.subr.mxu0 0.0
  %212 = vmatpush1.msra.mxu0 0.0
  %213 = vmatprep.subr.mxu0 0.0
  %214 = vmatpush1.msra.mxu0 0.0
  %215 = vmatprep.subr.mxu0 0.0
  %216 = vmatpush1.msra.mxu0 0.0
  %217 = vmatprep.subr.mxu0 0.0
  %218 = vmatpush1.msra.mxu0 0.0
  %219 = vmatprep.subr.mxu0 0.0
  %220 = vmatpush1.msra.mxu0 0.0
  %221 = vmatprep.subr.mxu0 0.0
  %222 = vmatpush1.msra.mxu0 0.0
  %223 = vmatprep.subr.mxu0 0.0
  %224 = vmatpush1.msra.mxu0 0.0
  %225 = vmatprep.subr.mxu0 0.0
  %226 = vmatpush1.msra.mxu0 0.0
  %227 = vmatprep.mubr.f32.mxu0 0.0
  %228 = vmatmul.mubr.f32.gmra.mrb[0].mxu0 %v138
  %v229 = vpop.f32.mrb[0].mxu0
  %v230 = vadd.f32 %v161, %v229
  %v231 = vpop.f32.mrb[0].mxu0
  %232 = vmatprep.mubr.f32.mxu0 0.0
  %233 = vmatmul.mubr.f32.gmra.mrb[0].mxu0 %v139
  %v234 = vpop.f32.mrb[0].mxu0
  %v235 = vadd.f32 %v161, %v234
  %v236 = vpop.f32.mrb[0].mxu0
  %237 = vdwg.mxu0
  %v238 = vxor.u32 %v230, 2147483648
  %v239 = vxor.u32 %v235, 2147483648
  %v240 = vmul.f32 %v238, 1.442695
  %v241 = vpow.pop %v240
  %v242 = vmul.f32 %v239, 1.442695
  %v243 = vpow.pop %v242
  %v244 = vadd.f32 %v241, 1.0
  %v245 = vadd.f32 %v243, 1.0
  %v246 = vrcp.pop %v244
  %v247 = vmul.f32 1.0, %v246
  %v248 = vrcp.pop %v245
  %v249 = vmul.f32 1.0, %v248
  %v250 = vmul.f32 %v230, %v247
  %v251 = vmul.f32 %v235, %v249
  %v252 = vld [vmem:[%s5] sm:$0xff]
  %v253 = vld [vmem:[%s5 + $0x8] sm:$0xff]
  %v254 = vld [vmem:[%s5 + $0x10] sm:$0xff]
  %v255 = vld [vmem:[%s5 + $0x18] sm:$0xff]
  %v256 = vld [vmem:[%s5 + $0x20] sm:$0xff]
  %v257 = vld [vmem:[%s5 + $0x28] sm:$0xff]
  %v258 = vld [vmem:[%s5 + $0x30] sm:$0xff]
  %v259 = vld [vmem:[%s5 + $0x38] sm:$0xff]
  %v260 = vld [vmem:[%s5 + $0x40] sm:$0xff]
  %v261 = vld [vmem:[%s5 + $0x48] sm:$0xff]
  %v262 = vld [vmem:[%s5 + $0x50] sm:$0xff]
  %v263 = vld [vmem:[%s5 + $0x58] sm:$0xff]
  %v264 = vld [vmem:[%s5 + $0x60] sm:$0xff]
  %v265 = vld [vmem:[%s5 + $0x68] sm:$0xff]
  %v266 = vld [vmem:[%s5 + $0x70] sm:$0xff]
  %v267 = vld [vmem:[%s5 + $0x78] sm:$0xff]
  %v268 = vld [vmem:[%s6] sm:$0x1]
  %v270 = vlaneseq
  %v271 = vshrl.u32 %v270, 7
  %v272 = vsub.s32 0, %v271
  %v273 = vrot.slane %v268, %v272
  %275 = vmatprep.subr.mxu0 0.0
  %276 = vmatpush1.msra.mxu0 %v252
  %277 = vmatprep.subr.mxu0 0.0
  %278 = vmatpush1.msra.mxu0 %v253
  %279 = vmatprep.subr.mxu0 0.0
  %280 = vmatpush1.msra.mxu0 %v254
  %281 = vmatprep.subr.mxu0 0.0
  %282 = vmatpush1.msra.mxu0 %v255
  %283 = vmatprep.subr.mxu0 0.0
  %284 = vmatpush1.msra.mxu0 %v256
  %285 = vmatprep.subr.mxu0 0.0
  %286 = vmatpush1.msra.mxu0 %v257
  %287 = vmatprep.subr.mxu0 0.0
  %288 = vmatpush1.msra.mxu0 %v258
  %289 = vmatprep.subr.mxu0 0.0
  %290 = vmatpush1.msra.mxu0 %v259
  %291 = vmatprep.subr.mxu0 0.0
  %292 = vmatpush1.msra.mxu0 %v260
  %293 = vmatprep.subr.mxu0 0.0
  %294 = vmatpush1.msra.mxu0 %v261
  %295 = vmatprep.subr.mxu0 0.0
  %296 = vmatpush1.msra.mxu0 %v262
  %297 = vmatprep.subr.mxu0 0.0
  %298 = vmatpush1.msra.mxu0 %v263
  %299 = vmatprep.subr.mxu0 0.0
  %300 = vmatpush1.msra.mxu0 %v264
  %301 = vmatprep.subr.mxu0 0.0
  %302 = vmatpush1.msra.mxu0 %v265
  %303 = vmatprep.subr.mxu0 0.0
  %304 = vmatpush1.msra.mxu0 %v266
  %305 = vmatprep.subr.mxu0 0.0
  %306 = vmatpush1.msra.mxu0 %v267
  %307 = vmatprep.subr.mxu0 0.0
  %308 = vmatpush1.msra.mxu0 0.0
  %309 = vmatprep.subr.mxu0 0.0
  %310 = vmatpush1.msra.mxu0 0.0
  %311 = vmatprep.subr.mxu0 0.0
  %312 = vmatpush1.msra.mxu0 0.0
  %313 = vmatprep.subr.mxu0 0.0
  %314 = vmatpush1.msra.mxu0 0.0
  %315 = vmatprep.subr.mxu0 0.0
  %316 = vmatpush1.msra.mxu0 0.0
  %317 = vmatprep.subr.mxu0 0.0
  %318 = vmatpush1.msra.mxu0 0.0
  %319 = vmatprep.subr.mxu0 0.0
  %320 = vmatpush1.msra.mxu0 0.0
  %321 = vmatprep.subr.mxu0 0.0
  %322 = vmatpush1.msra.mxu0 0.0
  %323 = vmatprep.subr.mxu0 0.0
  %324 = vmatpush1.msra.mxu0 0.0
  %325 = vmatprep.subr.mxu0 0.0
  %326 = vmatpush1.msra.mxu0 0.0
  %327 = vmatprep.subr.mxu0 0.0
  %328 = vmatpush1.msra.mxu0 0.0
  %329 = vmatprep.subr.mxu0 0.0
  %330 = vmatpush1.msra.mxu0 0.0
  %331 = vmatprep.subr.mxu0 0.0
  %332 = vmatpush1.msra.mxu0 0.0
  %333 = vmatprep.subr.mxu0 0.0
  %334 = vmatpush1.msra.mxu0 0.0
  %335 = vmatprep.subr.mxu0 0.0
  %336 = vmatpush1.msra.mxu0 0.0
  %337 = vmatprep.subr.mxu0 0.0
  %338 = vmatpush1.msra.mxu0 0.0
  %339 = vmatprep.mubr.f32.mxu0 0.0
  %340 = vmatmul.mubr.f32.gmra.mrb[0].mxu0 %v250
  %v341 = vpop.f32.mrb[0].mxu0
  %v342 = vadd.f32 %v273, %v341
  %v343 = vpop.f32.mrb[0].mxu0
  %344 = vmatprep.mubr.f32.mxu0 0.0
  %345 = vmatmul.mubr.f32.gmra.mrb[0].mxu0 %v251
  %v346 = vpop.f32.mrb[0].mxu0
  %v347 = vadd.f32 %v273, %v346
  %v348 = vpop.f32.mrb[0].mxu0
  %349 = vdwg.mxu0
  %350 = vst [vmem:[%s7] sm:$0xff] %v342
  %351 = vst [vmem:[%s7 + $0x8] sm:$0xff] %v347
  // Predicated region
  $region30: #{mlp_forward.1} parent=0 // pred_check
    _
  $region31: #{mlp_forward.1} parent=0 // pred_check_branch
    %353 = sbr.rel (0) target = $region33
  $region32: #{mlp_forward.1} parent=0 // pred_region
    _
  $region33: #{mlp_forward.1} parent=0 // pred_fallthru
    _
  // Predicated region
  $region34: #{mlp_forward.1} parent=0 // pred_check
    _
  $region35: #{mlp_forward.1} parent=0 // pred_check_branch
    %355 = sbr.rel (0) target = $region37
  $region36: #{mlp_forward.1} parent=0 // pred_region
    _
  $region37: #{mlp_forward.1} parent=0 // pred_fallthru
    _

</llo_original>
